<compile_context>
chip_gen: v7x
topology: tpu7x:2x2x1
jax: 0.10.0
libtpu: 0.0.40
codegen_flags: <defaults>
</compile_context>

<pallas_src>
import jax
import jax.numpy as jnp
from jax.experimental import pallas as pl
from jax.experimental.pallas import tpu as pltpu

BN_EPS = 1e-5


# ------------------------------ Pallas kernel --------------------------------

def _fusion_kernel(x_ref, ah_ref, w_ref, bias_ref, ff_ref, o_ref, z_ref):
    # x_ref:    (1, Hx, Wx*Cin)    bf16  low-res guide map (one batch item)
    # ah_ref:   (TH, Hx)           bf16  H-interp rows for this output tile
    # w_ref:    (Wx*Cin, Wf*Cout)  bf16  folded [W-interp (x) (conv * BN-scale)]
    # bias_ref: (1, Wf*Cout)       f32   folded BN bias, tiled over Wf
    # ff_ref, o_ref: (1, TH, Wf*Cout) f32
    # z_ref:    (Hx, Wf*Cout)      bf16  VMEM scratch: low-res conv+W-interp

    # (1) Heavy matmul ONCE per batch item, at LOW H-resolution (Hx rows).
    @pl.when(pl.program_id(1) == 0)
    def _():
        z = jnp.dot(x_ref[0], w_ref[...], preferred_element_type=jnp.float32)
        z_ref[...] = z.astype(z_ref.dtype)

    # (2) Cheap per-tile H-direction bilinear interpolation (K = Hx).
    y = jnp.dot(ah_ref[...], z_ref[...], preferred_element_type=jnp.float32)

    # (3) BN bias + ReLU at high resolution (matches the original op order),
    #     then x_guide*ff + ff == ff * (x_guide + 1).
    y = jnp.maximum(y + bias_ref[...], 0.0)
    o_ref[0] = (ff_ref[0] * (y + 1.0)).astype(o_ref.dtype)


# --------------------------- parameter / folding prep -------------------------

def kaiming_normal_fan_out(key, shape_oihw):
    # nn.init.kaiming_normal_(w, mode='fan_out'); w is (out_ch, in_ch, kh, kw)
    out_ch, _, kh, kw = shape_oihw
    std = (2.0 / (out_ch * kh * kw)) ** 0.5
    return jax.random.normal(key, shape_oihw, dtype=jnp.float32) * std


def bn_fold(gamma, beta, running_mean, running_var, eps=BN_EPS):
    scale = gamma / jnp.sqrt(running_var + eps)
    bias = beta - running_mean * scale
    return scale, bias


def init_params(key, x_in, b_in, f_in):
    # conv1 (x_in -> b_in) exists in the module but is unused in forward().
    del x_in
    w2 = kaiming_normal_fan_out(key, (f_in, b_in, 1, 1))        # (out, in, 1, 1)
    scale, bias = bn_fold(jnp.ones((f_in,), jnp.float32),
                          jnp.zeros((f_in,), jnp.float32),
                          jnp.zeros((f_in,), jnp.float32),
                          jnp.ones((f_in,), jnp.float32))
    return {'wc': w2[:, :, 0, 0].T,          # (Cin=b_in, Cout=f_in)
            'bn2_scale': scale, 'bn2_bias': bias}


def _interp_matrix(in_size, out_size):
    # Matrix A of shape (out, in): A @ v == F.interpolate(v, align_corners=True)
    if out_size == 1:
        src = jnp.zeros((1,), jnp.float32)
    else:
        src = jnp.arange(out_size, dtype=jnp.float32) * ((in_size - 1) / (out_size - 1))
    i0 = jnp.clip(jnp.floor(src).astype(jnp.int32), 0, in_size - 1)
    i1 = jnp.clip(i0 + 1, 0, in_size - 1)
    frac = src - i0.astype(jnp.float32)
    rows = jnp.arange(out_size)
    m = jnp.zeros((out_size, in_size), jnp.float32)
    m = m.at[rows, i0].add(1.0 - frac)
    m = m.at[rows, i1].add(frac)
    return m


def _fold_params(params, Hx, Wx, Hf, Wf):
    """H-interp matrix + folded (W-interp x conv x BN-scale) weight + bias."""
    wc = params['wc']                                  # (Cin, Cout) f32
    Cin, Cout = wc.shape
    ah = _interp_matrix(Hx, Hf)                        # (Hf, Hx)
    aw = _interp_matrix(Wx, Wf)                        # (Wf, Wx)
    wc_s = wc * params['bn2_scale'][None, :]           # BN scale folded (f32, once)
    # big_w[wi*Cin + c, wo*Cout + k] = A_w[wo, wi] * (wc[c, k] * scale[k])
    big_w = jnp.einsum('ow,ck->wcok', aw, wc_s).reshape(Wx * Cin, Wf * Cout)
    bias_t = jnp.tile(params['bn2_bias'], Wf).reshape(1, Wf * Cout)
    return ah.astype(jnp.bfloat16), big_w.astype(jnp.bfloat16), bias_t


def _pick_tile(hf, target=128):
    # Largest divisor of Hf that is <= target (robust for any Hf).
    th = 1
    for d in range(1, min(hf, target) + 1):
        if hf % d == 0:
            th = d
    return th


# ------------------------------- forward wrapper ------------------------------

def fusion_forward(params, x_nhwc, ff_nhwc):
    """Fusion_Module.forward. x: (N,Hx,Wx,Cin) NHWC, ff: (N,Hf,Wf,Cout) NHWC."""
    N, Hx, Wx, Cin = x_nhwc.shape
    _, Hf, Wf, Cout = ff_nhwc.shape
    ah, big_w, bias_t = _fold_params(params, Hx, Wx, Hf, Wf)

    # Collapsing trailing contiguous dims is a free view; it puts Wx*Cin /
    # Wf*Cout on the lane axis (deep-K matmul, lane-dense output stores).
    x_flat = x_nhwc.reshape(N, Hx, Wx * Cin).astype(jnp.bfloat16)
    ff_flat = ff_nhwc.reshape(N, Hf, Wf * Cout).astype(jnp.float32)

    TH = _pick_tile(Hf)                 # divisor of Hf, up to 128 MXU rows
    grid = (N, Hf // TH)

    flops = (2 * N * Hx * (Wx * Cin) * (Wf * Cout)      # folded matmul, low res
             + 2 * N * Hf * Hx * (Wf * Cout)            # H-interp matmul
             + 3 * N * Hf * Wf * Cout)                  # epilogue
    bytes_accessed = (x_flat.size * 2 + ah.size * 2 + big_w.size * 2
                      + bias_t.size * 4 + ff_flat.size * 4
                      + N * Hf * Wf * Cout * 4)

    out_flat = pl.pallas_call(
        _fusion_kernel,
        out_shape=jax.ShapeDtypeStruct((N, Hf, Wf * Cout), jnp.float32),
        grid=grid,
        in_specs=[
            pl.BlockSpec((1, Hx, Wx * Cin), lambda n, h: (n, 0, 0)),    # x
            pl.BlockSpec((TH, Hx), lambda n, h: (h, 0)),                # A_h rows
            pl.BlockSpec((Wx * Cin, Wf * Cout), lambda n, h: (0, 0)),   # folded W
            pl.BlockSpec((1, Wf * Cout), lambda n, h: (0, 0)),          # BN bias
            pl.BlockSpec((1, TH, Wf * Cout), lambda n, h: (n, h, 0)),   # ff
        ],
        out_specs=pl.BlockSpec((1, TH, Wf * Cout), lambda n, h: (n, h, 0)),
        scratch_shapes=[pltpu.VMEM((Hx, Wf * Cout), jnp.bfloat16)],     # low-res z
        input_output_aliases={4: 0},          # reuse ff's HBM buffer for the output
        compiler_params=pltpu.CompilerParams(
            dimension_semantics=("parallel", "arbitrary")),
        cost_estimate=pl.CostEstimate(flops=flops, transcendentals=0,
                                      bytes_accessed=bytes_accessed),
    )(x_flat, ah, big_w, bias_t, ff_flat)

    return out_flat.reshape(N, Hf, Wf, Cout)


# ------------------------------ plain-JAX reference ---------------------------

def _interp_coeffs(in_size, out_size):
    if out_size == 1:
        src = jnp.zeros((1,), jnp.float32)
    else:
        src = jnp.arange(out_size, dtype=jnp.float32) * ((in_size - 1) / (out_size - 1))
    i0 = jnp.clip(jnp.floor(src).astype(jnp.int32), 0, in_size - 1)
    i1 = jnp.clip(i0 + 1, 0, in_size - 1)
    frac = src - i0.astype(jnp.float32)
    return i0, i1, frac


def bilinear_align_corners(x, out_h, out_w):
    # Matches F.interpolate(mode='bilinear', align_corners=True); x is NHWC.
    h0, h1, fh = _interp_coeffs(x.shape[1], out_h)
    w0, w1, fw = _interp_coeffs(x.shape[2], out_w)
    xh = (x[:, h0] * (1.0 - fh)[None, :, None, None]
          + x[:, h1] * fh[None, :, None, None])
    return (xh[:, :, w0] * (1.0 - fw)[None, None, :, None]
            + xh[:, :, w1] * fw[None, None, :, None])


# ------------------------------------ main ------------------------------------

if __name__ == "__main__":
    key = jax.random.PRNGKey(0)
    N = 2
    x_in, b_in, f_in = 8, 16, 32        # x_in only parameterizes the unused conv1
    Hx = Wx = 8                          # low-res guide map (input x)
    Hf = Wf = 16                         # high-res feature map (input ff)

    k_par, kx, kf = jax.random.split(key, 3)
    params = init_params(k_par, x_in, b_in, f_in)

    # PyTorch-convention NCHW inputs, transposed to NHWC for the kernel.
    x_nchw = jax.random.normal(kx, (N, b_in, Hx, Wx), jnp.float32)
    ff_nchw = jax.random.normal(kf, (N, f_in, Hf, Wf), jnp.float32)
    to_nhwc = lambda t: jnp.transpose(t, (0, 2, 3, 1))
    x, ff = to_nhwc(x_nchw), to_nhwc(ff_nchw)

    fwd = jax.jit(fusion_forward)
    out = jax.block_until_ready(fwd(params, x, ff))
    out_nchw = jnp.transpose(out, (0, 3, 1, 2))   # back to PyTorch convention

    # --- Reference 1: bit-matched math (same bf16 folding/order as kernel). ---
    ah, big_w, bias_t = _fold_params(params, Hx, Wx, Hf, Wf)
    x_flat = x.reshape(N, Hx, Wx * b_in).astype(jnp.bfloat16)
    ff_flat = ff.reshape(N, Hf, Wf * f_in)
    z = jnp.einsum('nhk,km->nhm', x_flat, big_w,
                   preferred_element_type=jnp.float32).astype(jnp.bfloat16)
    y = jnp.einsum('oh,nhm->nom', ah, z, preferred_element_type=jnp.float32)
    y = jnp.maximum(y + bias_t, 0.0)
    ref_matched = (ff_flat * (y + 1.0)).reshape(N, Hf, Wf, f_in)

    # --- Reference 2: straightforward f32 module semantics. ---
    # TODO(synk): this gather+lerp interpolation is reference-only glue; in the
    # kernel path the interpolation is expressed as matmuls and fully fused.
    xg = bilinear_align_corners(x, Hf, Wf)
    y32 = jnp.einsum('nhwc,ck->nhwk', xg, params['wc'])
    y32 = jnp.maximum(y32 * params['bn2_scale'] + params['bn2_bias'], 0.0)
    ref_f32 = ff * y32 + ff

    assert out.shape == (N, Hf, Wf, f_in)
    assert out_nchw.shape == (N, f_in, Hf, Wf)
    assert jnp.allclose(out, ref_matched, atol=5e-3, rtol=5e-3), \
        "kernel vs bf16-matched reference mismatch"
    assert jnp.allclose(out, ref_f32, atol=6e-2, rtol=6e-2), \
        "kernel vs f32 module-semantics reference mismatch"

    print("KERNEL_OK")
</pallas_src>

<mosaic_0001>
module attributes {stable_mosaic.version = 11 : i64} {
  func.func private @main(%arg0: i32) attributes {dimension_semantics = [#tpu.dimension_semantics<core_parallel>], iteration_bounds = array<i64: 2>, tpu.core_type = #tpu.core_type<sc_scalar_subcore>, window_params = []} {
    return
  }
}

module attributes {stable_mosaic.version = 11 : i64} {
  func.func private @main(%arg0: i32) attributes {dimension_semantics = [#tpu.dimension_semantics<core_parallel>], iteration_bounds = array<i64: 2>, tpu.core_type = #tpu.core_type<sc_scalar_subcore>, window_params = []} {
    return
  }
}

module attributes {stable_mosaic.version = 11 : i64} {
  func.func @_fusion_kernel(%arg0: i32, %arg1: i32, %arg2: memref<1x8x128xbf16, #tpu.memory_space<vmem>>, %arg3: memref<16x8xbf16, #tpu.memory_space<vmem>>, %arg4: memref<128x512xbf16, #tpu.memory_space<vmem>>, %arg5: memref<1x512xf32, #tpu.memory_space<vmem>>, %arg6: memref<1x16x512xf32, #tpu.memory_space<vmem>>, %arg7: memref<1x16x512xf32, #tpu.memory_space<vmem>>, %arg8: memref<8x512xbf16, #tpu.memory_space<vmem>>) attributes {dimension_semantics = [#tpu.dimension_semantics<parallel>, #tpu.dimension_semantics<arbitrary>], iteration_bounds = array<i64: 2, 1>, scalar_prefetch = 0 : i64, scratch_operands = 1 : i64, tpu.core_type = #tpu.core_type<tc>, window_params = [{transform_indices = @transform_0, window_bounds = array<i64: 1, 8, 128>}, {transform_indices = @transform_1, window_bounds = array<i64: 16, 8>}, {pipeline_mode = #tpu.pipeline_mode<synchronous>, transform_indices = @transform_2, window_bounds = array<i64: 128, 512>}, {pipeline_mode = #tpu.pipeline_mode<synchronous>, transform_indices = @transform_3, window_bounds = array<i64: 1, 512>}, {transform_indices = @transform_4, window_bounds = array<i64: 1, 16, 512>}, {transform_indices = @transform_5, window_bounds = array<i64: 1, 16, 512>}]} {
    %c0_i32 = arith.constant 0 : i32
    %0 = arith.cmpi eq, %arg1, %c0_i32 : i32
    %1 = arith.extui %0 : i1 to i32
    %c0_i32_0 = arith.constant 0 : i32
    %2 = arith.cmpi ne, %1, %c0_i32_0 : i32
    scf.if %2 {
      %c0_14 = arith.constant 0 : index
      %c0_15 = arith.constant 0 : index
      %c0_16 = arith.constant 0 : index
      %19 = vector.load %arg2[%c0_14, %c0_15, %c0_16] : memref<1x8x128xbf16, #tpu.memory_space<vmem>>, vector<1x8x128xbf16>
      %20 = vector.shape_cast %19 : vector<1x8x128xbf16> to vector<8x128xbf16>
      %c0_17 = arith.constant 0 : index
      %c0_18 = arith.constant 0 : index
      %21 = vector.load %arg4[%c0_17, %c0_18] : memref<128x512xbf16, #tpu.memory_space<vmem>>, vector<128x512xbf16>
      %cst_19 = arith.constant dense<0.000000e+00> : vector<8x512xf32>
      %22 = tpu.matmul %20, %21, %cst_19 {dimension_numbers = #tpu.dot_dimension_numbers<[1], [0], [0], [1], [0, 0, 1, 1], [], []>} : vector<8x128xbf16>, vector<128x512xbf16>, vector<8x512xf32> -> vector<8x512xf32>
      %23 = arith.truncf %22 : vector<8x512xf32> to vector<8x512xbf16>
      %c0_20 = arith.constant 0 : index
      %c0_21 = arith.constant 0 : index
      %24 = vector.load %arg8[%c0_20, %c0_21] : memref<8x512xbf16, #tpu.memory_space<vmem>>, vector<8x512xbf16>
      tpu.vector_store %arg8[%c0_20, %c0_21], %23 {strides = array<i32>} : memref<8x512xbf16, #tpu.memory_space<vmem>>, vector<8x512xbf16>,
    } else {
    }
    %c0 = arith.constant 0 : index
    %c0_1 = arith.constant 0 : index
    %3 = vector.load %arg3[%c0, %c0_1] : memref<16x8xbf16, #tpu.memory_space<vmem>>, vector<16x8xbf16>
    %c0_2 = arith.constant 0 : index
    %c0_3 = arith.constant 0 : index
    %4 = vector.load %arg8[%c0_2, %c0_3] : memref<8x512xbf16, #tpu.memory_space<vmem>>, vector<8x512xbf16>
    %cst = arith.constant dense<0.000000e+00> : vector<16x512xf32>
    %5 = tpu.matmul %3, %4, %cst {dimension_numbers = #tpu.dot_dimension_numbers<[1], [0], [0], [1], [0, 0, 1, 1], [], []>} : vector<16x8xbf16>, vector<8x512xbf16>, vector<16x512xf32> -> vector<16x512xf32>
    %c0_4 = arith.constant 0 : index
    %c0_5 = arith.constant 0 : index
    %6 = vector.load %arg5[%c0_4, %c0_5] : memref<1x512xf32, #tpu.memory_space<vmem>>, vector<1x512xf32>
    %7 = vector.broadcast %6 : vector<1x512xf32> to vector<16x512xf32>
    %8 = arith.addf %5, %7 : vector<16x512xf32>
    %cst_6 = arith.constant 0.000000e+00 : f32
    %9 = vector.broadcast %cst_6 : f32 to vector<16x512xf32>
    %10 = arith.maximumf %8, %9 : vector<16x512xf32>
    %c0_7 = arith.constant 0 : index
    %c0_8 = arith.constant 0 : index
    %c0_9 = arith.constant 0 : index
    %11 = vector.load %arg6[%c0_7, %c0_8, %c0_9] : memref<1x16x512xf32, #tpu.memory_space<vmem>>, vector<1x16x512xf32>
    %12 = vector.shape_cast %11 : vector<1x16x512xf32> to vector<16x512xf32>
    %cst_10 = arith.constant 1.000000e+00 : f32
    %13 = vector.broadcast %cst_10 : f32 to vector<16x512xf32>
    %14 = arith.addf %10, %13 : vector<16x512xf32>
    %15 = arith.mulf %12, %14 : vector<16x512xf32>
    %c0_11 = arith.constant 0 : index
    %c0_12 = arith.constant 0 : index
    %c0_13 = arith.constant 0 : index
    %16 = vector.load %arg7[%c0_11, %c0_12, %c0_13] : memref<1x16x512xf32, #tpu.memory_space<vmem>>, vector<1x16x512xf32>
    %17 = vector.shape_cast %16 : vector<1x16x512xf32> to vector<16x512xf32>
    %18 = vector.shape_cast %15 : vector<16x512xf32> to vector<1x16x512xf32>
    tpu.vector_store %arg7[%c0_11, %c0_12, %c0_13], %18 {strides = array<i32>} : memref<1x16x512xf32, #tpu.memory_space<vmem>>, vector<1x16x512xf32>,
    return
  }
  func.func @transform_0(%arg0: i32, %arg1: i32) -> (i32, i32, i32) {
    %c0_i32 = arith.constant 0 : i32
    %c0_i32_0 = arith.constant 0 : i32
    %c0_i32_1 = arith.constant 0 : i32
    return %arg0, %c0_i32, %c0_i32_0 : i32, i32, i32
  }
  func.func @transform_1(%arg0: i32, %arg1: i32) -> (i32, i32) {
    %c0_i32 = arith.constant 0 : i32
    %c0_i32_0 = arith.constant 0 : i32
    return %arg1, %c0_i32 : i32, i32
  }
  func.func @transform_2(%arg0: i32, %arg1: i32) -> (i32, i32) {
    %c0_i32 = arith.constant 0 : i32
    %c0_i32_0 = arith.constant 0 : i32
    %c0_i32_1 = arith.constant 0 : i32
    return %c0_i32, %c0_i32_0 : i32, i32
  }
  func.func @transform_3(%arg0: i32, %arg1: i32) -> (i32, i32) {
    %c0_i32 = arith.constant 0 : i32
    %c0_i32_0 = arith.constant 0 : i32
    %c0_i32_1 = arith.constant 0 : i32
    return %c0_i32, %c0_i32_0 : i32, i32
  }
  func.func @transform_4(%arg0: i32, %arg1: i32) -> (i32, i32, i32) {
    %c0_i32 = arith.constant 0 : i32
    %c0_i32_0 = arith.constant 0 : i32
    return %arg0, %arg1, %c0_i32 : i32, i32, i32
  }
  func.func @transform_5(%arg0: i32, %arg1: i32) -> (i32, i32, i32) {
    %c0_i32 = arith.constant 0 : i32
    %c0_i32_0 = arith.constant 0 : i32
    return %arg0, %arg1, %c0_i32 : i32, i32, i32
  }
}

</mosaic_0001>

<llo_original>
// kernel: tile.8
$region0: #{tile.8}
  #allocation0 [shape = 's32[1]{0}', space=sflag, size = 0x4, scoped, tag = 'scoped memory for tile.8']
  %s0 = inlined_call_operand.vmem [shape: f32[32], index: 0, kind: input, shape index: {}]
  %s1 = inlined_call_operand.vmem [shape: f32[16,32], index: 1, kind: output, shape index: {}]
  // Predicated region
  $region2: #{tile.8} parent=0 // pred_check
    _
  $region3: #{tile.8} parent=0 // pred_check_branch
    %3 = sbr.rel (0) target = $region5
  $region4: #{tile.8} parent=0 // pred_region
    _
  $region5: #{tile.8} parent=0 // pred_fallthru
    _
  %v4 = vld [vmem:[%s0] ss:$0 sm:$0xff]
  %5 = vst [vmem:[%s1] sm:$0xff] %v4
  %s6 = scalar_lea.vmem %s1, 8
  %7 = vst [vmem:[%s6] sm:$0xff] %v4

// kernel: tile.9
$region0: #{tile.9}
  %s0 = inlined_call_operand.vmem [shape: f32[16,32], index: 0, kind: input, shape index: {}]
  %s1 = inlined_call_operand.vmem [shape: f32[1,512], index: 1, kind: output, shape index: {}]
  $region1: #{tile.9} parent=0
    #allocation0 [shape = 'u8[16384]{0}', space=vmem, size = 0x4000, scoped, tag = 'scoped mem for output reshape']
    %v2 = vld [vmem:[%s0] ss:$4 sm:$0xf]
    %vm3 = vcmask 261120
    %4 = vst.msk [vmem:[#allocation0] ss:$8 sm:$0xf] %vm3, %v2
    %s5 = scalar_lea.vmem %s0, 3
    %v6 = vld [vmem:[%s5] ss:$4 sm:$0xf]
    %7 = vrot.lane.b32.xlu0 %v6, 96
    %v8 = vpop.permute.xlu0 %7
    %vm9 = vcmask 1048320
    %10 = vst.msk [vmem:[#allocation0] ss:$8 sm:$0xf] %vm9, %v8
    %s11 = scalar_lea.vmem %s0, 2
    %v12 = vld [vmem:[%s11] ss:$4 sm:$0xf]
    %13 = vrot.lane.b32.xlu0 %v12, 64
    %v14 = vpop.permute.xlu0 %13
    %vm15 = vcmask 785920
    %16 = vst.msk [vmem:[#allocation0] ss:$8 sm:$0xf] %vm15, %v14
    %s17 = scalar_lea.vmem %s0, 1
    %v18 = vld [vmem:[%s17] ss:$4 sm:$0xf]
    %19 = vrot.lane.b32.xlu0 %v18, 32
    %v20 = vpop.permute.xlu0 %19
    %vm21 = vcmask 523520
    %22 = vst.msk [vmem:[#allocation0] ss:$8 sm:$0xf] %vm21, %v20
    %s24 = sshllo.u32 0, 1
    %v26 = vld [vmem:[#allocation0] sm:%s24]
    %s27 = sshllo.u32 0, 1
    %28 = vst [vmem:[%s1] sm:%s27] %v26
    %s29 = scalar_lea.vmem [#allocation0], 8
    %v30 = vld [vmem:[%s29] sm:%s24]
    %s31 = sshllo.u32 0, 1
    %s32 = scalar_lea.vmem %s1, 1
    %33 = vst [vmem:[%s32] sm:%s31] %v30
    %s34 = scalar_lea.vmem [#allocation0], 16
    %v35 = vld [vmem:[%s34] sm:%s24]
    %s36 = sshllo.u32 0, 1
    %s37 = smul.addr 1, 2
    %s38 = scalar_lea.vmem %s1, %s37
    %39 = vst [vmem:[%s38] sm:%s36] %v35
    %s40 = scalar_lea.vmem [#allocation0], 24
    %v41 = vld [vmem:[%s40] sm:%s24]
    %s42 = sshllo.u32 0, 1
    %s43 = smul.addr 1, 3
    %s44 = scalar_lea.vmem %s1, %s43
    %45 = vst [vmem:[%s44] sm:%s42] %v41

</llo_original>
